<compile_context>
chip_gen: v7x
topology: tpu7x:2x2x1
jax: 0.10.0
libtpu: 0.0.40
codegen_flags: <defaults>
</compile_context>

<pallas_src>
import functools

import jax
import jax.numpy as jnp
from jax.experimental import pallas as pl
from jax.experimental.pallas import tpu as pltpu


# ----------------------------- small helpers ---------------------------------
def _cdiv(a, b):
    return -(-a // b)


def _round_up(x, m):
    return _cdiv(x, m) * m


_VMEM_CAP_CACHE = None


def _tpu_vmem_capacity_bytes():
    """Per-TensorCore VMEM capacity (conservative 64 MiB fallback == v7x)."""
    global _VMEM_CAP_CACHE
    if _VMEM_CAP_CACHE is None:
        cap = 64 << 20
        try:
            info = pltpu.get_tpu_info()
            c = int(getattr(info, "vmem_capacity_bytes", 0) or 0)
            if c > 0:
                cap = c
        except Exception:
            pass
        _VMEM_CAP_CACHE = cap
    return _VMEM_CAP_CACHE


_Y_CHUNK = 1024  # max live lane-width of the two-layer intermediate


# ------------------------------ tile selection --------------------------------
def _choose_l_tile(l_total, c_in, c_out, fc, in_item, out_item):
    """Pick the column tile (lanes) and a matching vmem_limit (Python ints).

    Generation aware: ~0.75*VMEM working-set budget on 128-MiB parts
    (v5e/v6e), ~0.60*VMEM on 64-MiB v7x.  Keeps >=2 (target 4) grid blocks
    when l_total permits (v7x megacore sharding + DMA/compute overlap) while
    staying >=512 lanes where possible for HBM efficiency.
    """
    cap = _tpu_vmem_capacity_bytes()
    big_vmem = cap >= (96 << 20)                  # v5e / v6e (128 MiB VMEM)
    budget = int(cap * (0.75 if big_vmem else 0.60))
    max_tile = 8192 if big_vmem else 4096

    weight_bytes = (c_out * c_in if fc == 0 else fc * (c_in + c_out)) * in_item
    weight_bytes += (c_out + max(fc, 1)) * 4      # f32 biases

    def working_set(t):
        b = 2 * c_in * t * in_item                    # double-buffered x tiles
        b += 2 * c_out * t * out_item                 # double-buffered out tiles
        b += fc * min(t, _Y_CHUNK) * (4 + in_item)    # chunked intermediate y
        return b + weight_bytes

    if l_total < 128:
        tile = l_total                                # one full block, no padding
    else:
        tile = min(_round_up(max_tile, 128), _round_up(l_total, 128))
        if l_total >= 256:                            # >= 2 blocks when possible
            tile = min(tile, _round_up(_cdiv(l_total, 2), 128))
        four_cap = _round_up(_cdiv(l_total, 4), 128)
        if four_cap >= 512:                           # >= 4 blocks if tiles stay big
            tile = min(tile, four_cap)
        while tile > 128 and working_set(tile) > budget:
            tile -= 128
        # TODO(synk): if weights alone exceed the budget (very large C_in/C_out),
        # fall back to tiling the weight over C_out instead of bottoming at 128.

    ws = working_set(max(tile, 128))
    vmem_limit = int(min(cap - (2 << 20), max(ws + (8 << 20), 32 << 20)))
    return tile, vmem_limit


# ----------------------------- Pallas kernels --------------------------------
def _fused_fc_kernel(x_ref, w_ref, b_ref, o_ref):
    # x: (C_in, Lt) bf16, w: (C_out, C_in) bf16, b: (C_out, 1) f32
    z = jnp.dot(w_ref[...], x_ref[...], preferred_element_type=jnp.float32)
    o_ref[...] = (z + b_ref[...]).astype(o_ref.dtype)


def _make_two_layer_kernel(l_tile, max_chunk=_Y_CHUNK):
    """Two chained 1x1 convs; static column chunks bound the live (fc, chunk)
    intermediate so bigger tiles on 128-MiB parts don't spill VMEM."""
    bounds = list(range(0, l_tile, max_chunk)) + [l_tile]

    def kernel(x_ref, w1_ref, b1_ref, w2_ref, b2_ref, o_ref):
        w1 = w1_ref[...]
        w2 = w2_ref[...]
        b1 = b1_ref[...]
        b2 = b2_ref[...]
        for s, e in zip(bounds[:-1], bounds[1:]):
            y = jnp.dot(w1, x_ref[:, s:e], preferred_element_type=jnp.float32)
            y = (y + b1).astype(w2.dtype)             # bf16 for the 2nd MXU pass
            z = jnp.dot(w2, y, preferred_element_type=jnp.float32)
            o_ref[:, s:e] = (z + b2).astype(o_ref.dtype)

    return kernel


# ------------------------------ kernel wrapper --------------------------------
def m2mrf_fc(x_cols, weights, c_out, *, compute_dtype=jnp.bfloat16,
             out_dtype=jnp.bfloat16):
    """Fused sample_fc(+sample_fc1) over unfolded patch columns.

    x_cols : (C_in, L) patch columns (batch folded into L).
    weights: (w, b) pre-fused single matmul, or (w1, b1, w2, b2).
    Returns (C_out, L) in out_dtype.
    """
    c_in, l_total = x_cols.shape
    fused = len(weights) == 2
    fc = 0 if fused else weights[0].shape[0]

    in_item = jnp.dtype(compute_dtype).itemsize
    out_item = jnp.dtype(out_dtype).itemsize
    l_tile, vmem_limit = _choose_l_tile(l_total, c_in, c_out, fc,
                                        in_item, out_item)

    x_cols = x_cols.astype(compute_dtype)   # no-op when caller already cast

    # Weights/biases: whole-array resident in VMEM -> no per-step double-buffer.
    vmem = pl.BlockSpec(memory_space=pltpu.MemorySpace.VMEM)
    x_spec = pl.BlockSpec((c_in, l_tile), lambda j: (0, j))

    if fused:
        kernel = _fused_fc_kernel
        w, b = weights
        args = (x_cols, w.astype(compute_dtype), b.astype(jnp.float32))
        in_specs = [x_spec, vmem, vmem]
    else:
        kernel = _make_two_layer_kernel(l_tile)
        w1, b1, w2, b2 = weights
        args = (x_cols, w1.astype(compute_dtype), b1.astype(jnp.float32),
                w2.astype(compute_dtype), b2.astype(jnp.float32))
        in_specs = [x_spec, vmem, vmem, vmem, vmem]

    # No explicit pad / slice: cdiv grid + partial-block semantics.  Columns
    # are independent, so garbage in the padded tail of the last input block
    # only produces out-of-bounds output columns, which the masked writeback
    # discards.
    return pl.pallas_call(
        kernel,
        out_shape=jax.ShapeDtypeStruct((c_out, l_total), out_dtype),
        grid_spec=pltpu.PrefetchScalarGridSpec(
            num_scalar_prefetch=0,
            grid=(_cdiv(l_total, l_tile),),
            in_specs=in_specs,
            out_specs=pl.BlockSpec((c_out, l_tile), lambda j: (0, j)),
        ),
        compiler_params=pltpu.CompilerParams(
            dimension_semantics=("parallel",),
            vmem_limit_bytes=vmem_limit,
        ),
    )(*args)


# ------------------------------- JAX glue -------------------------------------
def unfold_to_cols(x, k):
    # nn.Unfold(kernel_size=k, stride=k, padding=0), batch folded into columns:
    # (n, c, h, w) -> (c*k*k, n*(h//k)*(w//k)).  Cast x to the compute dtype
    # BEFORE calling so (under jit) XLA fuses convert+transpose in one pass.
    n, c, h, w = x.shape
    gh, gw = h // k, w // k
    x = x.reshape(n, c, gh, k, gw, k)
    x = x.transpose(1, 3, 5, 0, 2, 4)          # (c, kh, kw, n, gh, gw)
    return x.reshape(c * k * k, n * gh * gw)


def fold_from_cols(cols, n, out_h, out_w, k):
    # nn.Fold(output_size, kernel_size=k, stride=k, padding=0); non-overlapping
    # -> pure placement.  cols: (c*k*k, n*(out_h//k)*(out_w//k)).
    ckk = cols.shape[0]
    c = ckk // (k * k)
    gh, gw = out_h // k, out_w // k
    x = cols.reshape(c, k, k, n, gh, gw)
    x = x.transpose(3, 0, 4, 1, 5, 2)          # (n, c, gh, kh, gw, kw)
    return x.reshape(n, c, out_h, out_w)


@functools.partial(jax.jit,
                   static_argnames=("size", "k_fold", "c_out",
                                    "compute_dtype", "inter_dtype", "out_dtype"))
def _m2mrf_forward(x, weights, *, size, k_fold, c_out,
                   compute_dtype, inter_dtype, out_dtype):
    n, _, h, w = x.shape
    out_h = (h // size) * k_fold
    out_w = (w // size) * k_fold
    x_cols = unfold_to_cols(x.astype(compute_dtype), size)   # one bf16 HBM pass
    z = m2mrf_fc(x_cols, weights, c_out,
                 compute_dtype=compute_dtype, out_dtype=inter_dtype)
    out = fold_from_cols(z, n, out_h, out_w, k_fold)          # bf16 fold read
    return out.astype(out_dtype)                              # f32 only at the end


# --------------------------------- module -------------------------------------
class M2MRF_Module:
    """JAX/Pallas port of the PyTorch M2MRF_Module forward (groups=1 only)."""

    def __init__(self, scale_factor, encode_channels, fc_channels, size,
                 groups=1, key=jax.random.PRNGKey(0), dtype=jnp.float32,
                 compute_dtype=jnp.bfloat16, inter_dtype=jnp.bfloat16,
                 out_dtype=jnp.float32):
        assert groups == 1, "only groups=1 implemented"
        assert float(size * scale_factor).is_integer(), \
            "size * scale_factor must be an integer for Fold"
        self.scale_factor = scale_factor
        self.encode_channels = encode_channels
        self.fc_channels = fc_channels
        self.size = size
        self.compute_dtype = compute_dtype
        self.inter_dtype = inter_dtype          # kernel output / pre-fold dtype
        self.out_dtype = out_dtype              # final module output dtype
        self.k_fold = int(size * scale_factor)
        self.c_in = size * size * encode_channels
        self.c_out = int(size * size * scale_factor * scale_factor
                         * encode_channels)

        k1, k2 = jax.random.split(key)

        def xavier_uniform(k, shape):
            fan_out, fan_in = shape
            bound = (6.0 / (fan_in + fan_out)) ** 0.5
            return jax.random.uniform(k, shape, dtype, -bound, bound)

        # Conv1d kernel_size=1 weights squeezed to 2-D; xavier_init -> bias=0.
        self.w1 = xavier_uniform(k1, (fc_channels, self.c_in))
        self.b1 = jnp.zeros((fc_channels, 1), dtype)
        self.w2 = xavier_uniform(k2, (self.c_out, fc_channels))
        self.b2 = jnp.zeros((self.c_out, 1), dtype)

        # Inference-time pre-fusion of the two 1x1 convs when it reduces both
        # FLOPs and the resident weight footprint.  Product is kept in f32 and
        # only cast to bf16 at kernel-call time (limits the extra rounding the
        # review flagged).
        self.fuse = (self.c_out * self.c_in
                     <= fc_channels * (self.c_in + self.c_out))
        if self.fuse:
            self.w_fused = jnp.dot(self.w2, self.w1)
            self.b_fused = jnp.dot(self.w2, self.b1) + self.b2

    def _weights(self):
        if self.fuse:
            return (self.w_fused, self.b_fused)
        return (self.w1, self.b1, self.w2, self.b2)

    def __call__(self, x):
        n, c, h, w = x.shape
        assert c == self.encode_channels
        assert h % self.size == 0 and w % self.size == 0
        assert float(h * self.scale_factor).is_integer()
        assert float(w * self.scale_factor).is_integer()
        return _m2mrf_forward(x, self._weights(),
                              size=self.size, k_fold=self.k_fold,
                              c_out=self.c_out,
                              compute_dtype=self.compute_dtype,
                              inter_dtype=self.inter_dtype,
                              out_dtype=self.out_dtype)

    # ----- references (plain JAX, no Pallas) ---------------------------------
    def reference(self, x):
        """Same math / dtype rounding as the kernel path (tight comparison)."""
        n, c, h, w = x.shape
        cd = self.compute_dtype
        x_cols = unfold_to_cols(x.astype(cd), self.size)
        if self.fuse:
            z = jnp.dot(self.w_fused.astype(cd), x_cols,
                        preferred_element_type=jnp.float32) + self.b_fused
        else:
            y = jnp.dot(self.w1.astype(cd), x_cols,
                        preferred_element_type=jnp.float32) + self.b1
            y = y.astype(cd)
            z = jnp.dot(self.w2.astype(cd), y,
                        preferred_element_type=jnp.float32) + self.b2
        z = z.astype(self.inter_dtype)
        out = fold_from_cols(z, n, int(h * self.scale_factor),
                             int(w * self.scale_factor), self.k_fold)
        return out.astype(self.out_dtype)

    def reference_f32(self, x):
        """Pure f32 two-layer math (original PyTorch module semantics)."""
        n, c, h, w = x.shape
        x_cols = unfold_to_cols(x.astype(jnp.float32), self.size)
        y = jnp.dot(self.w1, x_cols) + self.b1
        z = jnp.dot(self.w2, y) + self.b2
        return fold_from_cols(z, n, int(h * self.scale_factor),
                              int(w * self.scale_factor), self.k_fold)


if __name__ == "__main__":
    key = jax.random.PRNGKey(0)
    kx, kp1, kp2 = jax.random.split(key, 3)

    # Small shapes consistent with the module.
    n, c, h, w = 2, 4, 16, 16
    x = jax.random.normal(kx, (n, c, h, w), jnp.float32)

    # Downsample config (scale 0.5): pre-fused single-matmul kernel path.
    mod_down = M2MRF_Module(scale_factor=0.5, encode_channels=c,
                            fc_channels=32, size=4, groups=1, key=kp1)
    out_d = mod_down(x)
    jax.block_until_ready(out_d)
    assert out_d.shape == (n, c, 8, 8), out_d.shape
    assert out_d.dtype == jnp.float32
    ref_d = mod_down.reference(x)
    assert jnp.allclose(out_d, ref_d, atol=2e-2, rtol=2e-2), \
        float(jnp.max(jnp.abs(out_d - ref_d)))
    ref32_d = mod_down.reference_f32(x)
    rel_d = float(jnp.max(jnp.abs(out_d - ref32_d))
                  / (jnp.max(jnp.abs(ref32_d)) + 1e-6))
    assert rel_d < 0.1, rel_d   # bf16 operands/stores vs pure-f32 math (loose)

    # Upsample config (scale 2.0): two-matmul kernel path (fusion not profitable).
    mod_up = M2MRF_Module(scale_factor=2.0, encode_channels=c,
                          fc_channels=32, size=4, groups=1, key=kp2)
    out_u = mod_up(x)
    jax.block_until_ready(out_u)
    assert out_u.shape == (n, c, 32, 32), out_u.shape
    ref_u = mod_up.reference(x)
    assert jnp.allclose(out_u, ref_u, atol=2e-2, rtol=2e-2), \
        float(jnp.max(jnp.abs(out_u - ref_u)))
    ref32_u = mod_up.reference_f32(x)
    rel_u = float(jnp.max(jnp.abs(out_u - ref32_u))
                  / (jnp.max(jnp.abs(ref32_u)) + 1e-6))
    assert rel_u < 0.1, rel_u

    print("KERNEL_OK")
</pallas_src>

<mosaic_0001>
module attributes {stable_mosaic.version = 11 : i64} {
  func.func @_fused_fc_kernel(%arg0: i32, %arg1: memref<64x32xbf16, #tpu.memory_space<vmem>>, %arg2: memref<16x64xbf16, #tpu.memory_space<vmem>>, %arg3: memref<16x1xf32, #tpu.memory_space<vmem>>, %arg4: memref<16x32xbf16, #tpu.memory_space<vmem>>) attributes {dimension_semantics = [#tpu.dimension_semantics<parallel>], iteration_bounds = array<i64: 1>, scalar_prefetch = 0 : i64, scratch_operands = 0 : i64, tpu.core_type = #tpu.core_type<tc>, window_params = [{transform_indices = @transform_0, window_bounds = array<i64: 64, 32>}, {pipeline_mode = #tpu.pipeline_mode<synchronous>, transform_indices = @transform_1, window_bounds = array<i64: 16, 64>}, {pipeline_mode = #tpu.pipeline_mode<synchronous>, transform_indices = @transform_2, window_bounds = array<i64: 16, 1>}, {transform_indices = @transform_3, window_bounds = array<i64: 16, 32>}]} {
    %c0 = arith.constant 0 : index
    %c0_0 = arith.constant 0 : index
    %0 = vector.load %arg2[%c0, %c0_0] : memref<16x64xbf16, #tpu.memory_space<vmem>>, vector<16x64xbf16>
    %c0_1 = arith.constant 0 : index
    %c0_2 = arith.constant 0 : index
    %1 = vector.load %arg1[%c0_1, %c0_2] : memref<64x32xbf16, #tpu.memory_space<vmem>>, vector<64x32xbf16>
    %cst = arith.constant dense<0.000000e+00> : vector<16x32xf32>
    %2 = tpu.matmul %0, %1, %cst {dimension_numbers = #tpu.dot_dimension_numbers<[1], [0], [0], [1], [0, 0, 1, 1], [], []>} : vector<16x64xbf16>, vector<64x32xbf16>, vector<16x32xf32> -> vector<16x32xf32>
    %c0_3 = arith.constant 0 : index
    %c0_4 = arith.constant 0 : index
    %3 = vector.load %arg3[%c0_3, %c0_4] : memref<16x1xf32, #tpu.memory_space<vmem>>, vector<16x1xf32>
    %4 = vector.broadcast %3 : vector<16x1xf32> to vector<16x32xf32>
    %5 = arith.addf %2, %4 : vector<16x32xf32>
    %6 = arith.truncf %5 : vector<16x32xf32> to vector<16x32xbf16>
    %c0_5 = arith.constant 0 : index
    %c0_6 = arith.constant 0 : index
    %7 = vector.load %arg4[%c0_5, %c0_6] : memref<16x32xbf16, #tpu.memory_space<vmem>>, vector<16x32xbf16>
    tpu.vector_store %arg4[%c0_5, %c0_6], %6 {strides = array<i32>} : memref<16x32xbf16, #tpu.memory_space<vmem>>, vector<16x32xbf16>,
    return
  }
  func.func @transform_0(%arg0: i32) -> (i32, i32) {
    %c0_i32 = arith.constant 0 : i32
    %c0_i32_0 = arith.constant 0 : i32
    return %c0_i32, %arg0 : i32, i32
  }
  func.func @transform_1(%arg0: i32) -> (i32, i32) {
    %c0_i32 = arith.constant 0 : i32
    %c0_i32_0 = arith.constant 0 : i32
    %c0_i32_1 = arith.constant 0 : i32
    return %c0_i32, %c0_i32_0 : i32, i32
  }
  func.func @transform_2(%arg0: i32) -> (i32, i32) {
    %c0_i32 = arith.constant 0 : i32
    %c0_i32_0 = arith.constant 0 : i32
    %c0_i32_1 = arith.constant 0 : i32
    return %c0_i32, %c0_i32_0 : i32, i32
  }
  func.func @transform_3(%arg0: i32) -> (i32, i32) {
    %c0_i32 = arith.constant 0 : i32
    %c0_i32_0 = arith.constant 0 : i32
    return %c0_i32, %arg0 : i32, i32
  }
}

</mosaic_0001>

<llo_original>
// kernel: _m2mrf_forward.1
$region0: #{_m2mrf_forward.1}
  #allocation0 [shape = 'u32[]', space=smem, size = 0x4, offset = 0x4, fixed_abs, tag = 'smem constant byte address 0x4 - core index']
  #allocation1 [shape = 'u32[144,128]{1,0:T(1,128)}', space=vmem, size = 0x12000, scoped, tag = 'internal scratch']
  %s0 = inlined_call_operand.vmem [shape: bf16[64,32], index: 0, kind: input, shape index: {}]
  %s1 = inlined_call_operand.vmem [shape: bf16[16,64], index: 1, kind: input, shape index: {}]
  %s2 = inlined_call_operand.vmem [shape: f32[16,1], index: 2, kind: input, shape index: {}]
  %s3 = inlined_call_operand.vmem [shape: bf16[16,32], index: 3, kind: output, shape index: {}]
  %s4 = sld [smem:[#allocation0]]
  $region22: #{_m2mrf_forward.1} parent=0
    _
  %s6 = ssub.s32 1, %s4
  %s7 = scalar_select 0, %s6, %s4
  // Predicated region
  $region2: #{_m2mrf_forward.1} parent=0 // pred_check
    _
  $region3: #{_m2mrf_forward.1} parent=0 // pred_check_branch
    %9 = sbr.rel (0) target = $region5
  $region4: #{_m2mrf_forward.1} parent=0 // pred_region
    _
  $region5: #{_m2mrf_forward.1} parent=0 // pred_fallthru
    _
  // Predicated region
  $region6: #{_m2mrf_forward.1} parent=0 // pred_check
    _
  $region7: #{_m2mrf_forward.1} parent=0 // pred_check_branch
    %11 = sbr.rel (0) target = $region9
  $region8: #{_m2mrf_forward.1} parent=0 // pred_region
    _
  $region9: #{_m2mrf_forward.1} parent=0 // pred_fallthru
    _
  // Predicated region
  $region10: #{_m2mrf_forward.1} parent=0 // pred_check
    _
  $region11: #{_m2mrf_forward.1} parent=0 // pred_check_branch
    %13 = sbr.rel (0) target = $region13
  $region12: #{_m2mrf_forward.1} parent=0 // pred_region
    _
  $region13: #{_m2mrf_forward.1} parent=0 // pred_fallthru
    _
  %v15 = vld [vmem:[%s1] sm:$0xf]
  %v16 = vld [vmem:[%s1 + $0x4] sm:$0xf]
  %v17 = vld [vmem:[%s0] sm:$0xf]
  %v18 = vld [vmem:[%s0 + $0x4] sm:$0xf]
  %v19 = vld [vmem:[%s0 + $0x8] sm:$0xf]
  %v20 = vld [vmem:[%s0 + $0xc] sm:$0xf]
  %v21 = vld [vmem:[%s0 + $0x10] sm:$0xf]
  %v22 = vld [vmem:[%s0 + $0x14] sm:$0xf]
  %v23 = vld [vmem:[%s0 + $0x18] sm:$0xf]
  %v24 = vld [vmem:[%s0 + $0x1c] sm:$0xf]
  %v25 = vld [vmem:[%s2] sm:$0xff]
  %v26 = vld [vmem:[%s2 + $0x8] sm:$0xff]
  %28 = vset.pattern.permute.xlu0 0
  %29 = vperm.xlu0 %28, %v25
  %v30 = vpop.permute.xlu0 %29
  %33 = vset.pattern.permute.xlu0 0
  %34 = vperm.xlu0 %33, %v26
  %v35 = vpop.permute.xlu0 %34
  %v39 = vunpack.c.l.b16 %v15
  %v40 = vunpack.c.l.b16 %v16
  %v41 = vpack.c.b16 %v40, %v39
  %v50 = vunpack.c.l.b16 %v17
  %v51 = vunpack.c.l.b16 %v18
  %v52 = vunpack.c.l.b16 %v19
  %v53 = vunpack.c.l.b16 %v20
  %v54 = vunpack.c.l.b16 %v21
  %v55 = vunpack.c.l.b16 %v22
  %v56 = vunpack.c.l.b16 %v23
  %v57 = vunpack.c.l.b16 %v24
  %v58 = vpack.c.b16 %v51, %v50
  %v59 = vpack.c.b16 %v53, %v52
  %v60 = vpack.c.b16 %v55, %v54
  %v61 = vpack.c.b16 %v57, %v56
  %vm66 = vcmask 523264
  %v68 = vsel %vm66, %v41, 0
  %70 = vmatprep.subr.bf16.mxu0 0
  %71 = vmatpush1.bf16.msra.mxu0 %v58
  %72 = vmatprep.subr.bf16.mxu0 0
  %73 = vmatpush1.bf16.msra.mxu0 %v59
  %74 = vmatprep.subr.bf16.mxu0 0
  %75 = vmatpush1.bf16.msra.mxu0 %v60
  %76 = vmatprep.subr.bf16.mxu0 0
  %77 = vmatpush1.bf16.msra.mxu0 %v61
  %78 = vmatprep.subr.bf16.mxu0 0
  %79 = vmatpush1.bf16.msra.mxu0 0
  %80 = vmatprep.subr.bf16.mxu0 0
  %81 = vmatpush1.bf16.msra.mxu0 0
  %82 = vmatprep.subr.bf16.mxu0 0
  %83 = vmatpush1.bf16.msra.mxu0 0
  %84 = vmatprep.subr.bf16.mxu0 0
  %85 = vmatpush1.bf16.msra.mxu0 0
  %86 = vmatprep.subr.bf16.mxu0 0
  %87 = vmatpush1.bf16.msra.mxu0 0
  %88 = vmatprep.subr.bf16.mxu0 0
  %89 = vmatpush1.bf16.msra.mxu0 0
  %90 = vmatprep.subr.bf16.mxu0 0
  %91 = vmatpush1.bf16.msra.mxu0 0
  %92 = vmatprep.subr.bf16.mxu0 0
  %93 = vmatpush1.bf16.msra.mxu0 0
  %94 = vmatprep.subr.bf16.mxu0 0
  %95 = vmatpush1.bf16.msra.mxu0 0
  %96 = vmatprep.subr.bf16.mxu0 0
  %97 = vmatpush1.bf16.msra.mxu0 0
  %98 = vmatprep.subr.bf16.mxu0 0
  %99 = vmatpush1.bf16.msra.mxu0 0
  %100 = vmatprep.subr.bf16.mxu0 0
  %101 = vmatpush1.bf16.msra.mxu0 0
  %102 = vmatprep.mubr.bf16.mxu0 0
  %103 = vmatmul.mubr.bf16.gmra.mrb[0].mxu0 %v68
  %v104 = vpop.f32.mrb[0].mxu0
  %v105 = vadd.f32 %v30, %v104
  %v106 = vpop.f32.mrb[0].mxu0
  %v107 = vpop.f32.mrb[0].mxu0
  %v108 = vadd.f32 %v35, %v107
  %v109 = vpop.f32.mrb[0].mxu0
  %110 = vdwg.mxu0
  %v111 = vpack.c.bf16 %v108, %v105
  %v113 = vunpack.c.l.b16 %v111
  %v114 = vunpack.c.h.b16 %v111
  %v115 = vpack.c.b16 %v113, %v113
  %v116 = vpack.c.b16 %v114, %v114
  %vm119 = vcmask 257024
  %120 = vst.msk [vmem:[%s3] sm:$0xf] %vm119, %v115
  %121 = vst.msk [vmem:[%s3 + $0x4] sm:$0xf] %vm119, %v116
  // Predicated region
  $region14: #{_m2mrf_forward.1} parent=0 // pred_check
    _
  $region15: #{_m2mrf_forward.1} parent=0 // pred_check_branch
    %123 = sbr.rel (0) target = $region17
  $region16: #{_m2mrf_forward.1} parent=0 // pred_region
    _
  $region17: #{_m2mrf_forward.1} parent=0 // pred_fallthru
    _
  // Predicated region
  $region18: #{_m2mrf_forward.1} parent=0 // pred_check
    _
  $region19: #{_m2mrf_forward.1} parent=0 // pred_check_branch
    %125 = sbr.rel (0) target = $region21
  $region20: #{_m2mrf_forward.1} parent=0 // pred_region
    _
  $region21: #{_m2mrf_forward.1} parent=0 // pred_fallthru
    _

</llo_original>
